<compile_context>
chip_gen: v5e
topology: v5e:2x2
jax: 0.10.0
libtpu: 0.0.40
codegen_flags: <defaults>
</compile_context>

<pallas_src>
import jax
import jax.numpy as jnp
from jax.experimental import pallas as pl
from jax.experimental.pallas import tpu as pltpu

LANE = 128
SUBLANE = 8
TB_CAP = 512  # batch-tile cap; double-buffered tiles stay far under v7x's 64 MiB VMEM


def _round_up(x, m):
    return ((x + m - 1) // m) * m


def _pointer_kernel(enc_ref, dec_ref, wa_ref, wb_ref, b_ref, o_ref):
    """One batch tile of the folded pointer head.

    enc_ref: [TB, De]       input tile (cast to bf16 in-kernel for the MXU)
    dec_ref: [TB, Dd]       input tile
    wa_ref : [De, O_pad]    bf16 folded weight (encoder half), grid-resident
    wb_ref : [Dd, O_pad]    bf16 folded weight (decoder half), grid-resident
    b_ref  : [1,  O_pad]    f32 folded bias, grid-resident
    o_ref  : [TB, O_pad]    f32 lane-dense output slab
    """
    enc = enc_ref[...].astype(jnp.bfloat16)
    dec = dec_ref[...].astype(jnp.bfloat16)

    # Single folded affine map, K split across the two concat halves
    # (dropouts dp1/dp2/dp3 are identity at inference).
    y = jnp.dot(enc, wa_ref[...], preferred_element_type=jnp.float32)
    y = y + jnp.dot(dec, wb_ref[...], preferred_element_type=jnp.float32)
    y = y + b_ref[...]

    o_ref[...] = jax.nn.sigmoid(y).astype(o_ref.dtype)


def prepare_pointer_params(params):
    """One-time (load-time) prep: fold fc1 -> fc2 -> fc3 into one affine map.

    y = x @ (W1t @ W2t @ W3t) + (b1 @ W2t @ W3t + b2 @ W3t + b3)

    Weights are transposed to (in, out), the output dim is padded up to a
    lane-dense multiple of 128, and the folded weight is split into the
    encoder/decoder halves so the kernel never needs a concatenated input.
    """
    w1t = params["w1"].astype(jnp.float32).T  # [4H, 2H]
    w2t = params["w2"].astype(jnp.float32).T  # [2H,  H]
    w3t = params["w3"].astype(jnp.float32).T  # [ H,  O]
    b1 = params["b1"].astype(jnp.float32)
    b2 = params["b2"].astype(jnp.float32)
    b3 = params["b3"].astype(jnp.float32)

    w_eff = w1t @ w2t @ w3t                   # [4H, O]
    b_eff = b1 @ w2t @ w3t + b2 @ w3t + b3    # [O]

    out_dim = int(w_eff.shape[1])
    out_pad = _round_up(out_dim, LANE)
    w_eff = jnp.pad(w_eff, ((0, 0), (0, out_pad - out_dim)))
    b_eff = jnp.pad(b_eff, (0, out_pad - out_dim))

    split = w1t.shape[0] // 2                 # enc and dec are each 2H wide
    return {
        "wa": w_eff[:split].astype(jnp.bfloat16),   # [2H, out_pad]
        "wb": w_eff[split:].astype(jnp.bfloat16),   # [2H, out_pad]
        "b": b_eff[None, :].astype(jnp.float32),    # [1,  out_pad]
        "out_dim": out_dim,
    }


def pointer_network_forward(encoder_hidden, decoder_end_state, prepped):
    """Forward pass; `prepped` comes from prepare_pointer_params (called once)."""
    wa, wb, b = prepped["wa"], prepped["wb"], prepped["b"]
    out_dim = prepped["out_dim"]

    batch = encoder_hidden.shape[0]
    d_enc = encoder_hidden.shape[1]
    d_dec = decoder_end_state.shape[1]
    out_pad = wa.shape[1]

    # Batch tile: multiple of 8 sublanes, capped so tiles fit every generation.
    tb = min(TB_CAP, _round_up(batch, SUBLANE))
    b_padded = _round_up(batch, tb)
    if b_padded != batch:
        encoder_hidden = jnp.pad(encoder_hidden, ((0, b_padded - batch), (0, 0)))
        decoder_end_state = jnp.pad(decoder_end_state, ((0, b_padded - batch), (0, 0)))

    out = pl.pallas_call(
        _pointer_kernel,
        out_shape=jax.ShapeDtypeStruct((b_padded, out_pad), jnp.float32),
        grid=(b_padded // tb,),
        in_specs=[
            pl.BlockSpec((tb, d_enc), lambda i: (i, 0)),        # enc tile (pipelined)
            pl.BlockSpec((tb, d_dec), lambda i: (i, 0)),        # dec tile (pipelined)
            pl.BlockSpec((d_enc, out_pad), lambda i: (0, 0)),   # weights: VMEM-resident
            pl.BlockSpec((d_dec, out_pad), lambda i: (0, 0)),
            pl.BlockSpec((1, out_pad), lambda i: (0, 0)),       # bias: VMEM-resident
        ],
        out_specs=pl.BlockSpec((tb, out_pad), lambda i: (i, 0)),
        compiler_params=pltpu.CompilerParams(
            dimension_semantics=("parallel",)),
    )(encoder_hidden, decoder_end_state, wa, wb, b)

    return out[:batch, :out_dim]


def init_params(key, hidden_size, output_size):
    """Deterministic synthetic parameters, torch nn.Linear shape convention."""
    ks = jax.random.split(key, 6)
    in1, out1 = hidden_size * 2 * 2, hidden_size * 2
    in2, out2 = hidden_size * 2, hidden_size
    in3, out3 = hidden_size, output_size

    def lin(kw, kb, fan_in, fan_out):
        bound = 1.0 / jnp.sqrt(fan_in)
        w = jax.random.uniform(kw, (fan_out, fan_in), jnp.float32, -bound, bound)
        b = jax.random.uniform(kb, (fan_out,), jnp.float32, -bound, bound)
        return w, b

    w1, b1 = lin(ks[0], ks[1], in1, out1)
    w2, b2 = lin(ks[2], ks[3], in2, out2)
    w3, b3 = lin(ks[4], ks[5], in3, out3)
    return {"w1": w1, "b1": b1, "w2": w2, "b2": b2, "w3": w3, "b3": b3}


def reference_forward(encoder_hidden, decoder_end_state, params):
    """Unfolded f32 reference matching the PyTorch forward (eval mode)."""
    x = jnp.concatenate([encoder_hidden, decoder_end_state], axis=1)
    y = x @ params["w1"].T + params["b1"]
    y = y @ params["w2"].T + params["b2"]
    y = y @ params["w3"].T + params["b3"]
    return jax.nn.sigmoid(y)


if __name__ == "__main__":
    hidden_size = 32
    output_size = 16
    batch = 8

    key = jax.random.PRNGKey(0)
    k_enc, k_dec, k_par = jax.random.split(key, 3)

    # encoder_hidden and decoder_end_state are both [batch, 2*hidden]
    # (cat along dim 1 matches fc1's input dim of hidden*2*2).
    encoder_hidden = jax.random.normal(k_enc, (batch, 2 * hidden_size), jnp.float32)
    decoder_end_state = jax.random.normal(k_dec, (batch, 2 * hidden_size), jnp.float32)
    params = init_params(k_par, hidden_size, output_size)

    # One-time parameter folding (hoisted out of the per-step call path).
    prepped = prepare_pointer_params(params)

    # TODO(synk): dropout layers (dp1/dp2/dp3) are identity in eval mode; training-mode
    # RNG masking is not implemented.
    out = pointer_network_forward(encoder_hidden, decoder_end_state, prepped)
    out = jax.block_until_ready(out)

    ref = reference_forward(encoder_hidden, decoder_end_state, params)
    assert out.shape == (batch, output_size)
    # bf16 matmul inputs (f32 accumulate) -> tolerance ~1e-2 vs f32 reference.
    assert jnp.allclose(out, ref, atol=1e-2, rtol=0.0), float(jnp.max(jnp.abs(out - ref)))

    print("KERNEL_OK")
</pallas_src>

<mosaic_0001>
module attributes {stable_mosaic.version = 11 : i64} {
  func.func @_pointer_kernel(%arg0: i32, %arg1: memref<8x64xf32, #tpu.memory_space<vmem>>, %arg2: memref<8x64xf32, #tpu.memory_space<vmem>>, %arg3: memref<64x128xbf16, #tpu.memory_space<vmem>>, %arg4: memref<64x128xbf16, #tpu.memory_space<vmem>>, %arg5: memref<1x128xf32, #tpu.memory_space<vmem>>, %arg6: memref<8x128xf32, #tpu.memory_space<vmem>>) attributes {dimension_semantics = [#tpu.dimension_semantics<parallel>], iteration_bounds = array<i64: 1>, scalar_prefetch = 0 : i64, scratch_operands = 0 : i64, tpu.core_type = #tpu.core_type<tc>, window_params = [{transform_indices = @transform_0, window_bounds = array<i64: 8, 64>}, {transform_indices = @transform_1, window_bounds = array<i64: 8, 64>}, {pipeline_mode = #tpu.pipeline_mode<synchronous>, transform_indices = @transform_2, window_bounds = array<i64: 64, 128>}, {pipeline_mode = #tpu.pipeline_mode<synchronous>, transform_indices = @transform_3, window_bounds = array<i64: 64, 128>}, {pipeline_mode = #tpu.pipeline_mode<synchronous>, transform_indices = @transform_4, window_bounds = array<i64: 1, 128>}, {transform_indices = @transform_5, window_bounds = array<i64: 8, 128>}]} {
    %c0 = arith.constant 0 : index
    %c0_0 = arith.constant 0 : index
    %0 = vector.load %arg1[%c0, %c0_0] : memref<8x64xf32, #tpu.memory_space<vmem>>, vector<8x64xf32>
    %1 = arith.truncf %0 : vector<8x64xf32> to vector<8x64xbf16>
    %c0_1 = arith.constant 0 : index
    %c0_2 = arith.constant 0 : index
    %2 = vector.load %arg2[%c0_1, %c0_2] : memref<8x64xf32, #tpu.memory_space<vmem>>, vector<8x64xf32>
    %3 = arith.truncf %2 : vector<8x64xf32> to vector<8x64xbf16>
    %c0_3 = arith.constant 0 : index
    %c0_4 = arith.constant 0 : index
    %4 = vector.load %arg3[%c0_3, %c0_4] : memref<64x128xbf16, #tpu.memory_space<vmem>>, vector<64x128xbf16>
    %cst = arith.constant dense<0.000000e+00> : vector<8x128xf32>
    %5 = tpu.matmul %1, %4, %cst {dimension_numbers = #tpu.dot_dimension_numbers<[1], [0], [0], [1], [0, 0, 1, 1], [], []>} : vector<8x64xbf16>, vector<64x128xbf16>, vector<8x128xf32> -> vector<8x128xf32>
    %c0_5 = arith.constant 0 : index
    %c0_6 = arith.constant 0 : index
    %6 = vector.load %arg4[%c0_5, %c0_6] : memref<64x128xbf16, #tpu.memory_space<vmem>>, vector<64x128xbf16>
    %cst_7 = arith.constant dense<0.000000e+00> : vector<8x128xf32>
    %7 = tpu.matmul %3, %6, %cst_7 {dimension_numbers = #tpu.dot_dimension_numbers<[1], [0], [0], [1], [0, 0, 1, 1], [], []>} : vector<8x64xbf16>, vector<64x128xbf16>, vector<8x128xf32> -> vector<8x128xf32>
    %8 = arith.addf %5, %7 : vector<8x128xf32>
    %c0_8 = arith.constant 0 : index
    %c0_9 = arith.constant 0 : index
    %9 = vector.load %arg5[%c0_8, %c0_9] : memref<1x128xf32, #tpu.memory_space<vmem>>, vector<1x128xf32>
    %10 = vector.broadcast %9 : vector<1x128xf32> to vector<8x128xf32>
    %11 = arith.addf %8, %10 : vector<8x128xf32>
    %12 = arith.negf %11 : vector<8x128xf32>
    %13 = math.exp %12 : vector<8x128xf32>
    %cst_10 = arith.constant 1.000000e+00 : f32
    %14 = vector.broadcast %cst_10 : f32 to vector<8x128xf32>
    %15 = arith.addf %14, %13 : vector<8x128xf32>
    %16 = arith.divf %14, %15 : vector<8x128xf32>
    %c0_11 = arith.constant 0 : index
    %c0_12 = arith.constant 0 : index
    %17 = vector.load %arg6[%c0_11, %c0_12] : memref<8x128xf32, #tpu.memory_space<vmem>>, vector<8x128xf32>
    tpu.vector_store %arg6[%c0_11, %c0_12], %16 {strides = array<i32>} : memref<8x128xf32, #tpu.memory_space<vmem>>, vector<8x128xf32>,
    return
  }
  func.func @transform_0(%arg0: i32) -> (i32, i32) {
    %c0_i32 = arith.constant 0 : i32
    %c0_i32_0 = arith.constant 0 : i32
    return %arg0, %c0_i32 : i32, i32
  }
  func.func @transform_1(%arg0: i32) -> (i32, i32) {
    %c0_i32 = arith.constant 0 : i32
    %c0_i32_0 = arith.constant 0 : i32
    return %arg0, %c0_i32 : i32, i32
  }
  func.func @transform_2(%arg0: i32) -> (i32, i32) {
    %c0_i32 = arith.constant 0 : i32
    %c0_i32_0 = arith.constant 0 : i32
    %c0_i32_1 = arith.constant 0 : i32
    return %c0_i32, %c0_i32_0 : i32, i32
  }
  func.func @transform_3(%arg0: i32) -> (i32, i32) {
    %c0_i32 = arith.constant 0 : i32
    %c0_i32_0 = arith.constant 0 : i32
    %c0_i32_1 = arith.constant 0 : i32
    return %c0_i32, %c0_i32_0 : i32, i32
  }
  func.func @transform_4(%arg0: i32) -> (i32, i32) {
    %c0_i32 = arith.constant 0 : i32
    %c0_i32_0 = arith.constant 0 : i32
    %c0_i32_1 = arith.constant 0 : i32
    return %c0_i32, %c0_i32_0 : i32, i32
  }
  func.func @transform_5(%arg0: i32) -> (i32, i32) {
    %c0_i32 = arith.constant 0 : i32
    %c0_i32_0 = arith.constant 0 : i32
    return %arg0, %c0_i32 : i32, i32
  }
}

</mosaic_0001>

<llo_original>
// kernel: tpu_custom_call.1
$region0: #{tpu_custom_call.1}
  #allocation0 [shape = 'u32[]', space=smem, size = 0x4, offset = 0x4, fixed_abs, tag = 'smem constant byte address 0x4 - core index']
  #allocation1 [shape = 'u32[72,128]{1,0:T(1,128)}', space=vmem, size = 0x9000, scoped, tag = 'internal scratch']
  %s0 = inlined_call_operand.hbm [shape: f32[8,64], index: 0, kind: input, shape index: {}]
  %s1 = inlined_call_operand.hbm [shape: f32[8,64], index: 1, kind: input, shape index: {}]
  %s2 = inlined_call_operand.hbm [shape: bf16[64,128], index: 2, kind: input, shape index: {}]
  %s3 = inlined_call_operand.hbm [shape: bf16[64,128], index: 3, kind: input, shape index: {}]
  %s4 = inlined_call_operand.vmem [shape: f32[1,128], index: 4, kind: input, shape index: {}]
  %s5 = inlined_call_operand.hbm [shape: f32[8,128], index: 5, kind: output, shape index: {}]
  %s6 = sld [smem:[#allocation0]]
  $region46: #{tpu_custom_call.1} parent=0
    _
  %s8 = ssub.s32 1, %s6
  %s9 = scalar_select 0, %s8, %s6
  $region1: #{tpu_custom_call.1} parent=0
    #allocation2 [shape = 'u8[4096]{0}', space=vmem, size = 0x1000, scoped, tag = 'input window, operand 0, single buffered']
    #allocation3 [shape = 's32[1]{0}', space=sflag, size = 0x4, scoped, tag = 'scoped memory for tpu_custom_call.1']
    #allocation4 [shape = 's32[1]{0}', space=sflag, size = 0x4, scoped, tag = 'scoped memory for tpu_custom_call.1']
    #allocation5 [shape = 'u8[4096]{0}', space=vmem, size = 0x1000, scoped, tag = 'input window, operand 1, single buffered']
    #allocation6 [shape = 's32[1]{0}', space=sflag, size = 0x4, scoped, tag = 'scoped memory for tpu_custom_call.1']
    #allocation7 [shape = 'u8[16384]{0}', space=vmem, size = 0x4000, scoped, tag = 'input window, operand 2, single buffered']
    #allocation8 [shape = 'u8[16384]{0}', space=vmem, size = 0x4000, scoped, tag = 'input window, operand 3, single buffered']
    #allocation9 [shape = 's32[1]{0}', space=sflag, size = 0x4, scoped, tag = 'scoped memory for tpu_custom_call.1']
    #allocation10 [shape = 'u8[4096]{0}', space=vmem, size = 0x1000, scoped, tag = 'output window, operand 0, single buffered']
    %10 = vsyncpa [#allocation3], 0
    %11 = vsyncpa [#allocation6], 0
    %12 = vsyncpa [#allocation9], 0
    %13 = vsyncpa [#allocation4], 0
    // Predicated region
    $region2: #{tpu_custom_call.1} parent=1 // pred_check
      _
    $region3: #{tpu_custom_call.1} parent=1 // pred_check_branch
      %15 = sbr.rel (0) target = $region5
    $region4: #{tpu_custom_call.1} parent=1 // pred_region
      %17 = vsyncadd [#allocation3], 0
      %s19 = sshll.u32 %s0, 4
      %s20 = int_to_ptr.hbm [resolvable:$true] %s19
      %s21 = sshll.u32 [#allocation2], 4
      %s22 = int_to_ptr.vmem [resolvable:$true] %s21
      %24 = dma.hbm_to_vmem [thread:$0]  %s20, 128, %s22, [#allocation3]
    $region5: #{tpu_custom_call.1} parent=1 // pred_fallthru
      _
    // Predicated region
    $region6: #{tpu_custom_call.1} parent=1 // pred_check
      _
    $region7: #{tpu_custom_call.1} parent=1 // pred_check_branch
      %26 = sbr.rel (0) target = $region9
    $region8: #{tpu_custom_call.1} parent=1 // pred_region
      %28 = vsyncadd [#allocation6], 0
      %s30 = sshll.u32 %s1, 4
      %s31 = int_to_ptr.hbm [resolvable:$true] %s30
      %s32 = sshll.u32 [#allocation5], 4
      %s33 = int_to_ptr.vmem [resolvable:$true] %s32
      %35 = dma.hbm_to_vmem [thread:$0]  %s31, 128, %s33, [#allocation6]
    $region9: #{tpu_custom_call.1} parent=1 // pred_fallthru
      _
    // Predicated region
    $region10: #{tpu_custom_call.1} parent=1 // pred_check
      _
    $region11: #{tpu_custom_call.1} parent=1 // pred_check_branch
      %37 = sbr.rel (0) target = $region13
    $region12: #{tpu_custom_call.1} parent=1 // pred_region
      %39 = vsyncadd [#allocation6], 0
      %s40 = sshll.u32 %s2, 4
      %s41 = int_to_ptr.hbm [resolvable:$true] %s40
      %s42 = sshll.u32 [#allocation7], 4
      %s43 = int_to_ptr.vmem [resolvable:$true] %s42
      %48 = dma.hbm_to_vmem [thread:$0]  %s41, 512, %s43, [#allocation6], 64, 64, 4
    $region13: #{tpu_custom_call.1} parent=1 // pred_fallthru
      _
    // Predicated region
    $region14: #{tpu_custom_call.1} parent=1 // pred_check
      _
    $region15: #{tpu_custom_call.1} parent=1 // pred_check_branch
      %50 = sbr.rel (0) target = $region17
    $region16: #{tpu_custom_call.1} parent=1 // pred_region
      %52 = vsyncadd [#allocation9], 0
      %s53 = sshll.u32 %s3, 4
      %s54 = int_to_ptr.hbm [resolvable:$true] %s53
      %s55 = sshll.u32 [#allocation8], 4
      %s56 = int_to_ptr.vmem [resolvable:$true] %s55
      %61 = dma.hbm_to_vmem [thread:$0]  %s54, 512, %s56, [#allocation9], 64, 64, 4
    $region17: #{tpu_custom_call.1} parent=1 // pred_fallthru
      _
    // Predicated region
    $region18: #{tpu_custom_call.1} parent=1 // pred_check
      _
    $region19: #{tpu_custom_call.1} parent=1 // pred_check_branch
      %63 = sbr.rel (0) target = $region21
    $region20: #{tpu_custom_call.1} parent=1 // pred_region
      _
    $region21: #{tpu_custom_call.1} parent=1 // pred_fallthru
      _
    // Predicated region
    $region22: #{tpu_custom_call.1} parent=1 // pred_check
      _
    $region23: #{tpu_custom_call.1} parent=1 // pred_check_branch
      %65 = sbr.rel (0) target = $region25
    $region24: #{tpu_custom_call.1} parent=1 // pred_region
      %67 = dma.done [#allocation3], 128
    $region25: #{tpu_custom_call.1} parent=1 // pred_fallthru
      _
    // Predicated region
    $region26: #{tpu_custom_call.1} parent=1 // pred_check
      _
    $region27: #{tpu_custom_call.1} parent=1 // pred_check_branch
      %69 = sbr.rel (0) target = $region29
    $region28: #{tpu_custom_call.1} parent=1 // pred_region
      %71 = dma.done [#allocation6], 128
    $region29: #{tpu_custom_call.1} parent=1 // pred_fallthru
      _
    // Predicated region
    $region30: #{tpu_custom_call.1} parent=1 // pred_check
      _
    $region31: #{tpu_custom_call.1} parent=1 // pred_check_branch
      %73 = sbr.rel (0) target = $region33
    $region32: #{tpu_custom_call.1} parent=1 // pred_region
      %75 = dma.done [#allocation6], 512
    $region33: #{tpu_custom_call.1} parent=1 // pred_fallthru
      _
    // Predicated region
    $region34: #{tpu_custom_call.1} parent=1 // pred_check
      _
    $region35: #{tpu_custom_call.1} parent=1 // pred_check_branch
      %77 = sbr.rel (0) target = $region37
    $region36: #{tpu_custom_call.1} parent=1 // pred_region
      %79 = dma.done [#allocation9], 512
    $region37: #{tpu_custom_call.1} parent=1 // pred_fallthru
      _
    %v81 = vld [vmem:[#allocation2] sm:$0xff]
    %v82 = vpack.c.bf16 %v81, %v81
    %v83 = vld [vmem:[#allocation5] sm:$0xff]
    %v84 = vpack.c.bf16 %v83, %v83
    %v85 = vld [vmem:[#allocation7] sm:$0xf]
    %v86 = vld [vmem:[#allocation7 + $0x4] sm:$0xf]
    %v87 = vld [vmem:[#allocation7 + $0x8] sm:$0xf]
    %v88 = vld [vmem:[#allocation7 + $0xc] sm:$0xf]
    %v89 = vld [vmem:[#allocation7 + $0x10] sm:$0xf]
    %v90 = vld [vmem:[#allocation7 + $0x14] sm:$0xf]
    %v91 = vld [vmem:[#allocation7 + $0x18] sm:$0xf]
    %v92 = vld [vmem:[#allocation7 + $0x1c] sm:$0xf]
    %v93 = vld [vmem:[#allocation8] sm:$0xf]
    %v94 = vld [vmem:[#allocation8 + $0x4] sm:$0xf]
    %v95 = vld [vmem:[#allocation8 + $0x8] sm:$0xf]
    %v96 = vld [vmem:[#allocation8 + $0xc] sm:$0xf]
    %v97 = vld [vmem:[#allocation8 + $0x10] sm:$0xf]
    %v98 = vld [vmem:[#allocation8 + $0x14] sm:$0xf]
    %v99 = vld [vmem:[#allocation8 + $0x18] sm:$0xf]
    %v100 = vld [vmem:[#allocation8 + $0x1c] sm:$0xf]
    %v109 = vunpack.c.l.b16 %v93
    %v110 = vunpack.c.l.b16 %v94
    %v111 = vunpack.c.l.b16 %v95
    %v112 = vunpack.c.l.b16 %v96
    %v113 = vunpack.c.l.b16 %v97
    %v114 = vunpack.c.l.b16 %v98
    %v115 = vunpack.c.l.b16 %v99
    %v116 = vunpack.c.l.b16 %v100
    %v117 = vpack.c.b16 %v110, %v109
    %v118 = vpack.c.b16 %v112, %v111
    %v119 = vpack.c.b16 %v114, %v113
    %v120 = vpack.c.b16 %v116, %v115
    %vm125 = vcmask 523264
    %v127 = vsel %vm125, %v84, 0
    %129 = vmatpush.bf16.msra.mxu0 0
    %130 = vmatpush.bf16.msra.mxu0 0
    %131 = vmatpush.bf16.msra.mxu0 0
    %132 = vmatpush.bf16.msra.mxu0 0
    %133 = vmatpush.bf16.msra.mxu0 %v120
    %134 = vmatpush.bf16.msra.mxu0 %v119
    %135 = vmatpush.bf16.msra.mxu0 %v118
    %136 = vmatpush.bf16.msra.mxu0 %v117
    %137 = vmatmul.bf16.gmra.mxu0 %v127
    %v138 = vpop.f32.mrf.mxu0
    %v139 = vadd.f32 0.0, %v138
    %v140 = vpop.f32.mrf.mxu0
    %141 = vdwg.mxu0
    %v150 = vunpack.c.l.b16 %v85
    %v151 = vunpack.c.l.b16 %v86
    %v152 = vunpack.c.l.b16 %v87
    %v153 = vunpack.c.l.b16 %v88
    %v154 = vunpack.c.l.b16 %v89
    %v155 = vunpack.c.l.b16 %v90
    %v156 = vunpack.c.l.b16 %v91
    %v157 = vunpack.c.l.b16 %v92
    %v158 = vpack.c.b16 %v151, %v150
    %v159 = vpack.c.b16 %v153, %v152
    %v160 = vpack.c.b16 %v155, %v154
    %v161 = vpack.c.b16 %v157, %v156
    %v167 = vsel %vm125, %v82, 0
    %169 = vmatpush.bf16.msra.mxu0 0
    %170 = vmatpush.bf16.msra.mxu0 0
    %171 = vmatpush.bf16.msra.mxu0 0
    %172 = vmatpush.bf16.msra.mxu0 0
    %173 = vmatpush.bf16.msra.mxu0 %v161
    %174 = vmatpush.bf16.msra.mxu0 %v160
    %175 = vmatpush.bf16.msra.mxu0 %v159
    %176 = vmatpush.bf16.msra.mxu0 %v158
    %177 = vmatmul.bf16.gmra.mxu0 %v167
    %v178 = vpop.f32.mrf.mxu0
    %v179 = vadd.f32 %v139, %v178
    %v180 = vpop.f32.mrf.mxu0
    %181 = vdwg.mxu0
    %v182 = vld [vmem:[%s4] sm:$0x1]
    %v184 = vperm.slane %v182, 0
    %v186 = vadd.f32 %v179, %v184
    %v187 = vxor.u32 %v186, 2147483648
    %v188 = vmul.f32 %v187, 1.442695
    %v189 = vpow.pop %v188
    %v190 = vadd.f32 %v189, 1.0
    %v191 = vrcp.pop %v190
    %v192 = vmul.f32 %v190, %v191
    %v193 = vsub.f32 1.0, %v192
    %v194 = vmul.f32 %v191, %v193
    %v195 = vadd.f32 %v191, %v194
    %vm196 = vweird.f32 %v190
    %vm197 = vweird.f32 %v191
    %vm198 = vmor %vm196, %vm197
    %v199 = vsel %vm198, %v191, %v195
    %v200 = vand.u32 2147483647, %v190
    %vm201 = vcmp.eq.f32.partialorder %v200, 8.507059e+37
    %v202 = vand.u32 %v190, 2147483648
    %v203 = vor.u32 1.1754944e-38, %v202
    %v204 = vsel %vm201, %v203, %v199
    %v205 = vmul.f32 1.0, %v204
    %206 = vst [vmem:[#allocation10] sm:$0xff] %v205
    // Predicated region
    $region38: #{tpu_custom_call.1} parent=1 // pred_check
      _
    $region39: #{tpu_custom_call.1} parent=1 // pred_check_branch
      %208 = sbr.rel (0) target = $region41
    $region40: #{tpu_custom_call.1} parent=1 // pred_region
      %210 = vsyncadd [#allocation4], 0
      %s212 = sshll.u32 [#allocation10], 4
      %s213 = int_to_ptr.vmem [resolvable:$true] %s212
      %s214 = sshll.u32 %s5, 4
      %s215 = int_to_ptr.hbm [resolvable:$true] %s214
      %217 = dma.vmem_to_hbm [thread:$0]  %s213, 128, %s215, [#allocation4]
    $region41: #{tpu_custom_call.1} parent=1 // pred_fallthru
      _
    // Predicated region
    $region42: #{tpu_custom_call.1} parent=1 // pred_check
      _
    $region43: #{tpu_custom_call.1} parent=1 // pred_check_branch
      %219 = sbr.rel (0) target = $region45
    $region44: #{tpu_custom_call.1} parent=1 // pred_region
      %221 = dma.done [#allocation4], 128
    $region45: #{tpu_custom_call.1} parent=1 // pred_fallthru
      _
    %222 = vsyncpa [#allocation3], 1
    %223 = vsyncpa [#allocation6], 1
    %224 = vsyncpa [#allocation9], 1
    %225 = vsyncpa [#allocation4], 1

</llo_original>
